<compile_context>
chip_gen: v6e
topology: v6e:2x2x1
jax: 0.10.0
libtpu: 0.0.40
codegen_flags: <defaults>
</compile_context>

<pallas_src>
import jax
import jax.numpy as jnp
from jax.experimental import pallas as pl
from jax.experimental.pallas import tpu as pltpu

NEG_SLOPE = 0.01  # PyTorch F.leaky_relu default negative_slope


def _round_up(x, m):
    return ((x + m - 1) // m) * m


def gat_project_kernel(h_ref, wt_ref, a_ref, z_ref, s_ref):
    # h:  [TN, D_in]        node-feature tile
    # wt: [D_in, D_outp]    fc weight, pre-transposed in the wrapper (no .T in-kernel)
    # a:  [D_outp, 2]       col 0 = a_src, col 1 = a_dst halves of attn_fc weight
    h = h_ref[...]
    z = jnp.dot(h, wt_ref[...], preferred_element_type=jnp.float32)     # [TN, D_outp]
    z_ref[...] = z.astype(z_ref.dtype)
    # per-node attention scores: s[:, 0] = z . a_src, s[:, 1] = z . a_dst
    s_ref[...] = jnp.dot(z, a_ref[...],
                         preferred_element_type=jnp.float32).astype(s_ref.dtype)


def gat_attention_kernel(adj_ref, sdst_ref, ssrc_ref, z_ref, o_ref):
    # adj:  [TN, N]        adjacency tile for this dst-node tile (1.0 = edge src->dst)
    # sdst: [TN, 1]        destination scores for this tile
    # ssrc: [1, N]         source scores for ALL nodes (resident, row-oriented)
    # z:    [N, D_outp]    projected features for ALL nodes (resident)
    adj = adj_ref[...]

    # e[i, j] = leaky_relu( s_dst[i] + s_src[j] )  -- pure VPU broadcast, no transpose
    e = sdst_ref[...] + ssrc_ref[...]                         # [TN, N]
    e = jnp.where(e > 0.0, e, NEG_SLOPE * e)

    # masked softmax over incoming edges (axis=1); no inf/NaN intermediates:
    #   non-edges get e = -1e30 -> exp(...) == 0; all-masked rows get exp(0) * 0 == 0.
    e_masked = jnp.where(adj > 0.0, e, -1e30)
    m = jnp.max(e_masked, axis=1, keepdims=True)              # [TN, 1]
    p = jnp.exp(e_masked - m) * adj                           # [TN, N]
    denom = jnp.sum(p, axis=1, keepdims=True)
    # zero-in-degree (or padded) rows -> zeros instead of NaN
    alpha = p * pl.reciprocal(jnp.where(denom > 0.0, denom, 1.0), approx=False)

    # aggregate: h_out = alpha @ z   (MXU, no transpose)
    o_ref[...] = jnp.dot(alpha, z_ref[...],
                         preferred_element_type=jnp.float32).astype(o_ref.dtype)


def gat_forward(h, w_fc, w_attn, adj):
    """h: [N, D_in], w_fc: [D_out, D_in], w_attn: [1, 2*D_out], adj: [N, N] (adj[i,j]=1 iff j->i)."""
    n, d_in = h.shape
    d_out = w_fc.shape[0]

    # --- node-axis padding / tiling (padded rows have no edges -> zeros, sliced off) ---
    n_pad = _round_up(n, 8)
    if n_pad <= 128:
        tile_n = n_pad
    else:
        n_pad = _round_up(n, 128)
        tile_n = 128
    if n_pad != n:
        h = jnp.pad(h, ((0, n_pad - n), (0, 0)))
        adj = jnp.pad(adj, ((0, n_pad - n), (0, n_pad - n)))
    grid = (n_pad // tile_n,)

    # --- lane-dense output padding: zero-pad D_out to a multiple of 128 ---
    d_out_pad = _round_up(d_out, 128)
    a_src = w_attn[0, :d_out]
    a_dst = w_attn[0, d_out:]
    if d_out_pad != d_out:
        w_fc = jnp.pad(w_fc, ((0, d_out_pad - d_out), (0, 0)))   # zero output channels
        a_src = jnp.pad(a_src, (0, d_out_pad - d_out))
        a_dst = jnp.pad(a_dst, (0, d_out_pad - d_out))

    # One-time host-side layout prep (keeps the MXU fed without in-kernel transposes).
    wt = w_fc.T                                                  # [D_in, D_outp]
    a_cat = jnp.stack([a_src, a_dst], axis=1)                    # [D_outp, 2]

    # Pass 1: node-wise projection + attention scores (grid over node tiles).
    z, scores = pl.pallas_call(
        gat_project_kernel,
        grid=grid,
        out_shape=(jax.ShapeDtypeStruct((n_pad, d_out_pad), jnp.float32),
                   jax.ShapeDtypeStruct((n_pad, 2), jnp.float32)),
        in_specs=[
            pl.BlockSpec((tile_n, d_in), lambda i: (i, 0)),      # h tile
            pl.BlockSpec((d_in, d_out_pad), lambda i: (0, 0)),   # W^T resident
            pl.BlockSpec((d_out_pad, 2), lambda i: (0, 0)),      # attn weights resident
        ],
        out_specs=(
            pl.BlockSpec((tile_n, d_out_pad), lambda i: (i, 0)),
            pl.BlockSpec((tile_n, 2), lambda i: (i, 0)),
        ),
        compiler_params=pltpu.CompilerParams(
            dimension_semantics=("parallel",)),
    )(h, wt, a_cat)

    # Tiny host-side reshapes so both score operands enter kernel 2 with the
    # orientation needed for a transpose-free broadcast.
    s_src_row = scores[:, 0].reshape(1, n_pad)
    s_dst_col = scores[:, 1].reshape(n_pad, 1)

    # Pass 2: masked softmax over incoming edges + aggregation (grid over dst tiles).
    out = pl.pallas_call(
        gat_attention_kernel,
        grid=grid,
        out_shape=jax.ShapeDtypeStruct((n_pad, d_out_pad), jnp.float32),
        in_specs=[
            pl.BlockSpec((tile_n, n_pad), lambda i: (i, 0)),       # adjacency tile
            pl.BlockSpec((tile_n, 1), lambda i: (i, 0)),           # dst scores tile
            pl.BlockSpec((1, n_pad), lambda i: (0, 0)),            # src scores resident
            pl.BlockSpec((n_pad, d_out_pad), lambda i: (0, 0)),    # z resident
        ],
        out_specs=pl.BlockSpec((tile_n, d_out_pad), lambda i: (i, 0)),
        compiler_params=pltpu.CompilerParams(
            dimension_semantics=("parallel",)),
    )(adj, s_dst_col, s_src_row, z)

    return out[:n, :d_out]


def gat_reference(h, w_fc, w_attn, adj):
    d_out = w_fc.shape[0]
    z = h @ w_fc.T
    s_src = z @ w_attn[0, :d_out]
    s_dst = z @ w_attn[0, d_out:]
    e = s_dst[:, None] + s_src[None, :]
    e = jnp.where(e > 0.0, e, NEG_SLOPE * e)
    mask = adj > 0.0
    e_masked = jnp.where(mask, e, -1e30)
    m = jnp.max(e_masked, axis=1, keepdims=True)
    p = jnp.where(mask, jnp.exp(e - m), 0.0)
    denom = p.sum(axis=1, keepdims=True)
    alpha = p / jnp.where(denom > 0.0, denom, 1.0)
    return alpha @ z


if __name__ == "__main__":
    num_nodes = 16
    in_dim = 16
    out_dim = 8

    key = jax.random.PRNGKey(0)
    k_h, k_w, k_a, k_g = jax.random.split(key, 4)

    h = jax.random.normal(k_h, (num_nodes, in_dim), dtype=jnp.float32)
    # nn.Linear default init: U(-1/sqrt(fan_in), 1/sqrt(fan_in)); deterministic here.
    w_fc = jax.random.uniform(k_w, (out_dim, in_dim), dtype=jnp.float32,
                              minval=-1.0 / jnp.sqrt(in_dim),
                              maxval=1.0 / jnp.sqrt(in_dim))
    w_attn = jax.random.uniform(k_a, (1, 2 * out_dim), dtype=jnp.float32,
                                minval=-1.0 / jnp.sqrt(2 * out_dim),
                                maxval=1.0 / jnp.sqrt(2 * out_dim))

    # Random directed graph (adj[i, j] = 1 iff edge j -> i) plus self-loops so every
    # node has at least one incoming edge (matches DGL's per-mailbox softmax).
    adj = (jax.random.uniform(k_g, (num_nodes, num_nodes)) < 0.3).astype(jnp.float32)
    adj = jnp.maximum(adj, jnp.eye(num_nodes, dtype=jnp.float32))
    # TODO(synk): zero-in-degree nodes yield zeros here; DGL leaves such nodes at the
    # framework default rather than calling reduce_func (identical when self-loops exist).

    out = gat_forward(h, w_fc, w_attn, adj)
    out = jax.block_until_ready(out)

    ref = gat_reference(h, w_fc, w_attn, adj)
    assert out.shape == (num_nodes, out_dim)
    assert jnp.allclose(out, ref, atol=1e-4, rtol=1e-4), "mismatch vs JAX reference"

    print("KERNEL_OK")
</pallas_src>

<mosaic_0001>
module attributes {stable_mosaic.version = 11 : i64} {
  func.func @gat_project_kernel(%arg0: i32, %arg1: memref<16x16xf32, #tpu.memory_space<vmem>>, %arg2: memref<16x128xf32, #tpu.memory_space<vmem>>, %arg3: memref<128x2xf32, #tpu.memory_space<vmem>>, %arg4: memref<16x128xf32, #tpu.memory_space<vmem>>, %arg5: memref<16x2xf32, #tpu.memory_space<vmem>>) attributes {dimension_semantics = [#tpu.dimension_semantics<parallel>], iteration_bounds = array<i64: 1>, scalar_prefetch = 0 : i64, scratch_operands = 0 : i64, tpu.core_type = #tpu.core_type<tc>, window_params = [{transform_indices = @transform_0, window_bounds = array<i64: 16, 16>}, {pipeline_mode = #tpu.pipeline_mode<synchronous>, transform_indices = @transform_1, window_bounds = array<i64: 16, 128>}, {pipeline_mode = #tpu.pipeline_mode<synchronous>, transform_indices = @transform_2, window_bounds = array<i64: 128, 2>}, {transform_indices = @transform_3, window_bounds = array<i64: 16, 128>}, {transform_indices = @transform_4, window_bounds = array<i64: 16, 2>}]} {
    %c0 = arith.constant 0 : index
    %c0_0 = arith.constant 0 : index
    %0 = vector.load %arg1[%c0, %c0_0] : memref<16x16xf32, #tpu.memory_space<vmem>>, vector<16x16xf32>
    %c0_1 = arith.constant 0 : index
    %c0_2 = arith.constant 0 : index
    %1 = vector.load %arg2[%c0_1, %c0_2] : memref<16x128xf32, #tpu.memory_space<vmem>>, vector<16x128xf32>
    %cst = arith.constant dense<0.000000e+00> : vector<16x128xf32>
    %2 = tpu.matmul %0, %1, %cst {dimension_numbers = #tpu.dot_dimension_numbers<[1], [0], [0], [1], [0, 0, 1, 1], [], []>} : vector<16x16xf32>, vector<16x128xf32>, vector<16x128xf32> -> vector<16x128xf32>
    %c0_3 = arith.constant 0 : index
    %c0_4 = arith.constant 0 : index
    %3 = vector.load %arg4[%c0_3, %c0_4] : memref<16x128xf32, #tpu.memory_space<vmem>>, vector<16x128xf32>
    tpu.vector_store %arg4[%c0_3, %c0_4], %2 {strides = array<i32>} : memref<16x128xf32, #tpu.memory_space<vmem>>, vector<16x128xf32>,
    %c0_5 = arith.constant 0 : index
    %c0_6 = arith.constant 0 : index
    %4 = vector.load %arg3[%c0_5, %c0_6] : memref<128x2xf32, #tpu.memory_space<vmem>>, vector<128x2xf32>
    %cst_7 = arith.constant dense<0.000000e+00> : vector<16x2xf32>
    %5 = tpu.matmul %2, %4, %cst_7 {dimension_numbers = #tpu.dot_dimension_numbers<[1], [0], [0], [1], [0, 0, 1, 1], [], []>} : vector<16x128xf32>, vector<128x2xf32>, vector<16x2xf32> -> vector<16x2xf32>
    %c0_8 = arith.constant 0 : index
    %c0_9 = arith.constant 0 : index
    %6 = vector.load %arg5[%c0_8, %c0_9] : memref<16x2xf32, #tpu.memory_space<vmem>>, vector<16x2xf32>
    tpu.vector_store %arg5[%c0_8, %c0_9], %5 {strides = array<i32>} : memref<16x2xf32, #tpu.memory_space<vmem>>, vector<16x2xf32>,
    return
  }
  func.func @transform_0(%arg0: i32) -> (i32, i32) {
    %c0_i32 = arith.constant 0 : i32
    %c0_i32_0 = arith.constant 0 : i32
    return %arg0, %c0_i32 : i32, i32
  }
  func.func @transform_1(%arg0: i32) -> (i32, i32) {
    %c0_i32 = arith.constant 0 : i32
    %c0_i32_0 = arith.constant 0 : i32
    %c0_i32_1 = arith.constant 0 : i32
    return %c0_i32, %c0_i32_0 : i32, i32
  }
  func.func @transform_2(%arg0: i32) -> (i32, i32) {
    %c0_i32 = arith.constant 0 : i32
    %c0_i32_0 = arith.constant 0 : i32
    %c0_i32_1 = arith.constant 0 : i32
    return %c0_i32, %c0_i32_0 : i32, i32
  }
  func.func @transform_3(%arg0: i32) -> (i32, i32) {
    %c0_i32 = arith.constant 0 : i32
    %c0_i32_0 = arith.constant 0 : i32
    return %arg0, %c0_i32 : i32, i32
  }
  func.func @transform_4(%arg0: i32) -> (i32, i32) {
    %c0_i32 = arith.constant 0 : i32
    %c0_i32_0 = arith.constant 0 : i32
    return %arg0, %c0_i32 : i32, i32
  }
}

</mosaic_0001>

<llo_original>
// kernel: tpu_custom_call.1
$region0: #{tpu_custom_call.1}
  #allocation0 [shape = 'u32[]', space=smem, size = 0x4, offset = 0x4, fixed_abs, tag = 'smem constant byte address 0x4 - core index']
  #allocation1 [shape = 'u32[144,128]{1,0:T(1,128)}', space=vmem, size = 0x12000, scoped, tag = 'internal scratch']
  %s0 = inlined_call_operand.vmem [shape: f32[16,16], index: 0, kind: input, shape index: {}]
  %s1 = inlined_call_operand.vmem [shape: f32[16,128], index: 1, kind: input, shape index: {}]
  %s2 = inlined_call_operand.vmem [shape: f32[128,2], index: 2, kind: input, shape index: {}]
  %s3 = inlined_call_operand.hbm [shape: f32[16,128], index: 3, kind: output, shape index: {0}]
  %s4 = inlined_call_operand.vmem [shape: f32[16,2], index: 4, kind: output, shape index: {1}]
  %5 = xla_tuple %s3, %s4
  %s6 = sld [smem:[#allocation0]]
  $region30: #{tpu_custom_call.1} parent=0
    _
  %s8 = ssub.s32 1, %s6
  %s9 = scalar_select 0, %s8, %s6
  $region1: #{tpu_custom_call.1} parent=0
    #allocation2 [shape = 'u8[8192]{0}', space=vmem, size = 0x2000, scoped, tag = 'output window, operand 0, single buffered']
    #allocation3 [shape = 's32[1]{0}', space=sflag, size = 0x4, scoped, tag = 'scoped memory for tpu_custom_call.1']
    %10 = vsyncpa [#allocation3], 0
    // Predicated region
    $region2: #{tpu_custom_call.1} parent=1 // pred_check
      _
    $region3: #{tpu_custom_call.1} parent=1 // pred_check_branch
      %12 = sbr.rel (0) target = $region5
    $region4: #{tpu_custom_call.1} parent=1 // pred_region
      _
    $region5: #{tpu_custom_call.1} parent=1 // pred_fallthru
      _
    // Predicated region
    $region6: #{tpu_custom_call.1} parent=1 // pred_check
      _
    $region7: #{tpu_custom_call.1} parent=1 // pred_check_branch
      %14 = sbr.rel (0) target = $region9
    $region8: #{tpu_custom_call.1} parent=1 // pred_region
      _
    $region9: #{tpu_custom_call.1} parent=1 // pred_fallthru
      _
    // Predicated region
    $region10: #{tpu_custom_call.1} parent=1 // pred_check
      _
    $region11: #{tpu_custom_call.1} parent=1 // pred_check_branch
      %16 = sbr.rel (0) target = $region13
    $region12: #{tpu_custom_call.1} parent=1 // pred_region
      _
    $region13: #{tpu_custom_call.1} parent=1 // pred_fallthru
      _
    %v17 = vld [vmem:[%s0] sm:$0xff]
    %v18 = vld [vmem:[%s0 + $0x8] sm:$0xff]
    %v19 = vld [vmem:[%s1] sm:$0xff]
    %v20 = vld [vmem:[%s1 + $0x8] sm:$0xff]
    %vm21 = vcmask 130048
    %v23 = vsel %vm21, %v17, 0
    %v26 = vsel %vm21, %v18, 0
    %28 = vmatprep.subr.mxu0 0.0
    %29 = vmatpush1.msra.mxu0 0.0
    %30 = vmatprep.subr.mxu0 0.0
    %31 = vmatpush1.msra.mxu0 0.0
    %32 = vmatprep.subr.mxu0 0.0
    %33 = vmatpush1.msra.mxu0 0.0
    %34 = vmatprep.subr.mxu0 0.0
    %35 = vmatpush1.msra.mxu0 0.0
    %36 = vmatprep.subr.mxu0 0.0
    %37 = vmatpush1.msra.mxu0 0.0
    %38 = vmatprep.subr.mxu0 0.0
    %39 = vmatpush1.msra.mxu0 0.0
    %40 = vmatprep.subr.mxu0 0.0
    %41 = vmatpush1.msra.mxu0 0.0
    %42 = vmatprep.subr.mxu0 0.0
    %43 = vmatpush1.msra.mxu0 0.0
    %44 = vmatprep.subr.mxu0 0.0
    %45 = vmatpush1.msra.mxu0 0.0
    %46 = vmatprep.subr.mxu0 0.0
    %47 = vmatpush1.msra.mxu0 0.0
    %48 = vmatprep.subr.mxu0 0.0
    %49 = vmatpush1.msra.mxu0 0.0
    %50 = vmatprep.subr.mxu0 0.0
    %51 = vmatpush1.msra.mxu0 0.0
    %52 = vmatprep.subr.mxu0 0.0
    %53 = vmatpush1.msra.mxu0 0.0
    %54 = vmatprep.subr.mxu0 0.0
    %55 = vmatpush1.msra.mxu0 0.0
    %56 = vmatprep.subr.mxu0 0.0
    %57 = vmatpush1.msra.mxu0 %v20
    %58 = vmatprep.subr.mxu0 0.0
    %59 = vmatpush1.msra.mxu0 %v19
    %60 = vmatprep.subr.mxu0 0.0
    %61 = vmatpush2.msra.mxu0 0.0
    %62 = vmatprep.subr.mxu0 0.0
    %63 = vmatpush2.msra.mxu0 0.0
    %64 = vmatprep.subr.mxu0 0.0
    %65 = vmatpush2.msra.mxu0 0.0
    %66 = vmatprep.subr.mxu0 0.0
    %67 = vmatpush2.msra.mxu0 0.0
    %68 = vmatprep.subr.mxu0 0.0
    %69 = vmatpush2.msra.mxu0 0.0
    %70 = vmatprep.subr.mxu0 0.0
    %71 = vmatpush2.msra.mxu0 0.0
    %72 = vmatprep.subr.mxu0 0.0
    %73 = vmatpush2.msra.mxu0 0.0
    %74 = vmatprep.subr.mxu0 0.0
    %75 = vmatpush2.msra.mxu0 0.0
    %76 = vmatprep.subr.mxu0 0.0
    %77 = vmatpush2.msra.mxu0 0.0
    %78 = vmatprep.subr.mxu0 0.0
    %79 = vmatpush2.msra.mxu0 0.0
    %80 = vmatprep.subr.mxu0 0.0
    %81 = vmatpush2.msra.mxu0 0.0
    %82 = vmatprep.subr.mxu0 0.0
    %83 = vmatpush2.msra.mxu0 0.0
    %84 = vmatprep.subr.mxu0 0.0
    %85 = vmatpush2.msra.mxu0 0.0
    %86 = vmatprep.subr.mxu0 0.0
    %87 = vmatpush2.msra.mxu0 0.0
    %88 = vmatprep.subr.mxu0 0.0
    %89 = vmatpush2.msra.mxu0 0.0
    %90 = vmatprep.subr.mxu0 0.0
    %91 = vmatpush2.msra.mxu0 0.0
    %92 = vmatprep.mubr.f32.mxu0 0.0
    %93 = vmatmul.mubr.f32.gmra.mxu0 %v23
    %v94 = vpop.f32.mrf.mxu0
    %v95 = vadd.f32 0.0, %v94
    %v96 = vpop.f32.mrf.mxu0
    %97 = vmatprep.mubr.f32.mxu0 0.0
    %98 = vmatmul.mubr.f32.gmra.mxu0 %v26
    %v99 = vpop.f32.mrf.mxu0
    %v100 = vadd.f32 0.0, %v99
    %v101 = vpop.f32.mrf.mxu0
    %102 = vdwg.mxu0
    %103 = vst [vmem:[#allocation2] sm:$0xff] %v95
    %104 = vst [vmem:[#allocation2 + $0x8] sm:$0xff] %v100
    %v105 = vld [vmem:[%s2] sm:$0xff]
    %v106 = vld [vmem:[%s2 + $0x8] sm:$0xff]
    %v107 = vld [vmem:[%s2 + $0x10] sm:$0xff]
    %v108 = vld [vmem:[%s2 + $0x18] sm:$0xff]
    %v109 = vld [vmem:[%s2 + $0x20] sm:$0xff]
    %v110 = vld [vmem:[%s2 + $0x28] sm:$0xff]
    %v111 = vld [vmem:[%s2 + $0x30] sm:$0xff]
    %v112 = vld [vmem:[%s2 + $0x38] sm:$0xff]
    %v113 = vld [vmem:[%s2 + $0x40] sm:$0xff]
    %v114 = vld [vmem:[%s2 + $0x48] sm:$0xff]
    %v115 = vld [vmem:[%s2 + $0x50] sm:$0xff]
    %v116 = vld [vmem:[%s2 + $0x58] sm:$0xff]
    %v117 = vld [vmem:[%s2 + $0x60] sm:$0xff]
    %v118 = vld [vmem:[%s2 + $0x68] sm:$0xff]
    %v119 = vld [vmem:[%s2 + $0x70] sm:$0xff]
    %v120 = vld [vmem:[%s2 + $0x78] sm:$0xff]
    %121 = vmatprep.subr.mxu0 0.0
    %122 = vmatpush1.msra.mxu0 %v120
    %123 = vmatprep.subr.mxu0 0.0
    %124 = vmatpush1.msra.mxu0 %v119
    %125 = vmatprep.subr.mxu0 0.0
    %126 = vmatpush1.msra.mxu0 %v118
    %127 = vmatprep.subr.mxu0 0.0
    %128 = vmatpush1.msra.mxu0 %v117
    %129 = vmatprep.subr.mxu0 0.0
    %130 = vmatpush1.msra.mxu0 %v116
    %131 = vmatprep.subr.mxu0 0.0
    %132 = vmatpush1.msra.mxu0 %v115
    %133 = vmatprep.subr.mxu0 0.0
    %134 = vmatpush1.msra.mxu0 %v114
    %135 = vmatprep.subr.mxu0 0.0
    %136 = vmatpush1.msra.mxu0 %v113
    %137 = vmatprep.subr.mxu0 0.0
    %138 = vmatpush1.msra.mxu0 %v112
    %139 = vmatprep.subr.mxu0 0.0
    %140 = vmatpush1.msra.mxu0 %v111
    %141 = vmatprep.subr.mxu0 0.0
    %142 = vmatpush1.msra.mxu0 %v110
    %143 = vmatprep.subr.mxu0 0.0
    %144 = vmatpush1.msra.mxu0 %v109
    %145 = vmatprep.subr.mxu0 0.0
    %146 = vmatpush1.msra.mxu0 %v108
    %147 = vmatprep.subr.mxu0 0.0
    %148 = vmatpush1.msra.mxu0 %v107
    %149 = vmatprep.subr.mxu0 0.0
    %150 = vmatpush1.msra.mxu0 %v106
    %151 = vmatprep.subr.mxu0 0.0
    %152 = vmatpush1.msra.mxu0 %v105
    %153 = vmatprep.subr.mxu0 0.0
    %154 = vmatpush2.msra.mxu0 0.0
    %155 = vmatprep.subr.mxu0 0.0
    %156 = vmatpush2.msra.mxu0 0.0
    %157 = vmatprep.subr.mxu0 0.0
    %158 = vmatpush2.msra.mxu0 0.0
    %159 = vmatprep.subr.mxu0 0.0
    %160 = vmatpush2.msra.mxu0 0.0
    %161 = vmatprep.subr.mxu0 0.0
    %162 = vmatpush2.msra.mxu0 0.0
    %163 = vmatprep.subr.mxu0 0.0
    %164 = vmatpush2.msra.mxu0 0.0
    %165 = vmatprep.subr.mxu0 0.0
    %166 = vmatpush2.msra.mxu0 0.0
    %167 = vmatprep.subr.mxu0 0.0
    %168 = vmatpush2.msra.mxu0 0.0
    %169 = vmatprep.subr.mxu0 0.0
    %170 = vmatpush2.msra.mxu0 0.0
    %171 = vmatprep.subr.mxu0 0.0
    %172 = vmatpush2.msra.mxu0 0.0
    %173 = vmatprep.subr.mxu0 0.0
    %174 = vmatpush2.msra.mxu0 0.0
    %175 = vmatprep.subr.mxu0 0.0
    %176 = vmatpush2.msra.mxu0 0.0
    %177 = vmatprep.subr.mxu0 0.0
    %178 = vmatpush2.msra.mxu0 0.0
    %179 = vmatprep.subr.mxu0 0.0
    %180 = vmatpush2.msra.mxu0 0.0
    %181 = vmatprep.subr.mxu0 0.0
    %182 = vmatpush2.msra.mxu0 0.0
    %183 = vmatprep.subr.mxu0 0.0
    %184 = vmatpush2.msra.mxu0 0.0
    %185 = vmatprep.mubr.f32.mxu0 0.0
    %186 = vmatmul.mubr.f32.gmra.mxu0 %v95
    %v187 = vpop.f32.mrf.mxu0
    %v188 = vadd.f32 0.0, %v187
    %v189 = vpop.f32.mrf.mxu0
    %190 = vmatprep.mubr.f32.mxu0 0.0
    %191 = vmatmul.mubr.f32.gmra.mxu0 %v100
    %v192 = vpop.f32.mrf.mxu0
    %v193 = vadd.f32 0.0, %v192
    %v194 = vpop.f32.mrf.mxu0
    %195 = vdwg.mxu0
    %vm196 = vcmask 15360
    %197 = vst.msk [vmem:[%s4] sm:$0xff] %vm196, %v188
    %198 = vst.msk [vmem:[%s4 + $0x8] sm:$0xff] %vm196, %v193
    // Predicated region
    $region14: #{tpu_custom_call.1} parent=1 // pred_check
      _
    $region15: #{tpu_custom_call.1} parent=1 // pred_check_branch
      %200 = sbr.rel (0) target = $region17
    $region16: #{tpu_custom_call.1} parent=1 // pred_region
      %s202 = ssub.s32 256, 256
      %203 = vsyncadd [#allocation3], %s202
      %s204 = sshll.u32 [#allocation2], 4
      %s205 = int_to_ptr.vmem [resolvable:$true] %s204
      %210 = dma.vmem_to_hbm [thread:$0]  %s205, 256, %s3, [#allocation3], 128, 128, 8
    $region17: #{tpu_custom_call.1} parent=1 // pred_fallthru
      _
    // Predicated region
    $region18: #{tpu_custom_call.1} parent=1 // pred_check
      _
    $region19: #{tpu_custom_call.1} parent=1 // pred_check_branch
      %212 = sbr.rel (0) target = $region21
    $region20: #{tpu_custom_call.1} parent=1 // pred_region
      _
    $region21: #{tpu_custom_call.1} parent=1 // pred_fallthru
      _
    // Predicated region
    $region22: #{tpu_custom_call.1} parent=1 // pred_check
      _
    $region23: #{tpu_custom_call.1} parent=1 // pred_check_branch
      %214 = sbr.rel (0) target = $region25
    $region24: #{tpu_custom_call.1} parent=1 // pred_region
      %215 = dma.done [#allocation3], 256
    $region25: #{tpu_custom_call.1} parent=1 // pred_fallthru
      _
    // Predicated region
    $region26: #{tpu_custom_call.1} parent=1 // pred_check
      _
    $region27: #{tpu_custom_call.1} parent=1 // pred_check_branch
      %217 = sbr.rel (0) target = $region29
    $region28: #{tpu_custom_call.1} parent=1 // pred_region
      _
    $region29: #{tpu_custom_call.1} parent=1 // pred_fallthru
      _
    %218 = vsyncpa [#allocation3], 1

</llo_original>
